<compile_context>
chip_gen: v7x
topology: tpu7x:2x2x1
jax: 0.10.0
libtpu: 0.0.40
codegen_flags: <defaults>
</compile_context>

<pallas_src>
import numpy as np
import jax
import jax.numpy as jnp
from jax.experimental import pallas as pl
from jax.experimental.pallas import tpu as pltpu


def _choose_tile(L_out, C_in, C_out, N, K, stride, itemsize=4,
                 budget_bytes=8 * 1024 * 1024):
    """Largest output-tile length whose double-buffered in+out blocks fit the budget."""
    def block_bytes(tl):
        w = (tl - 1) * stride + K
        wp = -(-w // stride) * stride
        packed_in = C_in * N * wp
        n_fir = N * wp - (K - 1)
        packed_out = C_out * (-(-n_fir // stride))
        return 2 * (packed_in + packed_out) * itemsize   # x2: double-buffered pipeline

    tl = min(L_out, 2048)
    while tl > 128 and block_bytes(tl) > budget_bytes:
        tl = max(128, tl // 2)
    return max(tl, 1)


def _make_dsc_kernel(K, stride, n_fir, use_mxu):
    """Kernel factory: closes over static conv hyper-parameters."""

    def kernel(x_ref, dw_w_ref, dw_b_ref, pw_w_ref, pw_b_ref, o_ref):
        # x_ref:    (C_in, P)      batch-packed, haloed input tile (P = N * Wp)
        # dw_w_ref: (C_in, K)      depthwise weights
        # dw_b_ref: (C_in, 1)      depthwise bias
        # pw_w_ref: (C_out, C_in)  pointwise weights
        # pw_b_ref: (C_out, 1)     pointwise bias
        # o_ref:    (C_out, D)     batch-packed, lane-dense output slab
        C_in = dw_w_ref.shape[0]
        C_out = pw_w_ref.shape[0]

        # Single load of the haloed tile; the FIR taps below are shifted slices of
        # the in-register value, not K separate unaligned VMEM loads.
        xw = x_ref[...].astype(jnp.float32)
        dw_w = dw_w_ref[...].astype(jnp.float32)

        acc = jnp.zeros((C_in, n_fir), dtype=jnp.float32)
        for k in range(K):                                   # K is tiny & static
            acc = acc + dw_w[:, k:k + 1] * xw[:, k:k + n_fir]
        acc = acc + dw_b_ref[...].astype(jnp.float32)        # (C_in, 1) broadcast

        if stride > 1:
            acc = acc[:, ::stride]        # decimate once after the full-res FIR

        pw_b = pw_b_ref[...].astype(jnp.float32)
        if use_mxu:
            # Pointwise conv == channel-mixing matmul with a wide, lane-dense N dim.
            lhs = pw_w_ref[...]
            rhs = acc.astype(jnp.bfloat16) if lhs.dtype == jnp.bfloat16 else acc
            out = jnp.dot(lhs, rhs, preferred_element_type=jnp.float32)
        else:
            # Tiny C_in/C_out: the MXU would be <1% utilized -> VPU broadcast-FMAs.
            pw_w = pw_w_ref[...].astype(jnp.float32)
            out = jnp.zeros((C_out, acc.shape[1]), dtype=jnp.float32)
            for c in range(C_in):                            # C_in < 32 here
                out = out + pw_w[:, c:c + 1] * acc[c:c + 1, :]

        o_ref[...] = (out + pw_b).astype(o_ref.dtype)

    return kernel


def depthwise_separable_conv1d(x, dw_w, dw_b, pw_w, pw_b, *, stride=1, padding=0):
    """x: (N, C_in, L); dw_w: (C_in, K); dw_b: (C_in,); pw_w: (C_out, C_in);
    pw_b: (C_out,).  Returns (N, C_out, L_out) — same semantics as
    nn.Conv1d(groups=C_in) followed by nn.Conv1d(kernel_size=1)."""
    N, C_in, L = x.shape
    C_out = pw_w.shape[0]
    K = dw_w.shape[1]
    s = stride
    L_out = (L + 2 * padding - K) // s + 1
    assert L_out > 0, "output length must be positive"

    itemsize = np.dtype(x.dtype).itemsize
    TL = _choose_tile(L_out, C_in, C_out, N, K, s, itemsize=itemsize)
    T = pl.cdiv(L_out, TL)

    W = (TL - 1) * s + K          # input window per output tile (includes K-1 halo)
    Wp = -(-W // s) * s           # pad so decimation stays batch-aligned
    P = N * Wp                    # packed (batch x window) lane width
    n_fir = P - (K - 1)           # full-resolution FIR width
    D = -(-n_fir // s)            # packed output width per tile

    # ---- wrapper-side layout plumbing (one fused XLA pad+gather pass over x) ----
    x_t = jnp.transpose(x, (1, 0, 2))                          # (C_in, N, L)
    need = (T * TL - 1) * s + K                                # last element referenced + 1
    pad_right = max(need - (L + padding), 0)
    x_pad = jnp.pad(x_t, ((0, 0), (0, 0), (padding, pad_right)))
    offs = (jnp.arange(T) * (TL * s))[:, None] + jnp.arange(W)[None, :]   # (T, W)
    x_win = x_pad[:, :, offs]                                  # (C_in, N, T, W)
    if Wp > W:
        x_win = jnp.pad(x_win, ((0, 0), (0, 0), (0, 0), (0, Wp - W)))
    x_win = jnp.transpose(x_win, (2, 0, 1, 3)).reshape(T, C_in, P)

    dw_b2 = dw_b.reshape(C_in, 1)
    pw_b2 = pw_b.reshape(C_out, 1)

    use_mxu = (C_in >= 32) or (C_out >= 32)
    kernel = _make_dsc_kernel(K, s, n_fir, use_mxu)

    cost = pl.CostEstimate(
        flops=int(2 * N * L_out * C_in * (K + C_out)),
        transcendentals=0,
        bytes_accessed=int(x_win.size * itemsize + T * C_out * D * itemsize
                           + 4 * (dw_w.size + dw_b.size + pw_w.size + pw_b.size)),
    )

    out_packed = pl.pallas_call(
        kernel,
        out_shape=jax.ShapeDtypeStruct((T, C_out, D), x.dtype),
        grid_spec=pltpu.PrefetchScalarGridSpec(
            num_scalar_prefetch=0,
            grid=(T,),
            in_specs=[
                pl.BlockSpec((None, C_in, P), lambda t: (t, 0, 0)),
                pl.BlockSpec((C_in, K), lambda t: (0, 0)),
                pl.BlockSpec((C_in, 1), lambda t: (0, 0)),
                pl.BlockSpec((C_out, C_in), lambda t: (0, 0)),
                pl.BlockSpec((C_out, 1), lambda t: (0, 0)),
            ],
            out_specs=pl.BlockSpec((None, C_out, D), lambda t: (t, 0, 0)),
        ),
        compiler_params=pltpu.CompilerParams(
            dimension_semantics=("parallel",),
            vmem_limit_bytes=32 * 1024 * 1024,
        ),
        cost_estimate=cost,
    )(x_win, dw_w, dw_b2, pw_w, pw_b2)

    # ---- unpack (batch x length) lanes back to (N, C_out, L_out) ---------------
    seg = Wp // s
    cols = jnp.arange(N)[:, None] * seg + jnp.arange(TL)[None, :]        # (N, TL)
    y = out_packed[:, :, cols]                                           # (T, C_out, N, TL)
    y = jnp.transpose(y, (2, 1, 0, 3)).reshape(N, C_out, T * TL)
    return y[:, :, :L_out]


def _ref_np(x, dw_w, dw_b, pw_w, pw_b, K, stride, padding):
    """NumPy reference reproducing nn.Conv1d(groups=C_in) + nn.Conv1d(k=1)."""
    x = np.asarray(x, np.float64)
    N, C_in, L = x.shape
    L_out = (L + 2 * padding - K) // stride + 1
    xp = np.pad(x, ((0, 0), (0, 0), (padding, padding)))
    y = np.zeros((N, C_in, L_out))
    for t in range(L_out):
        seg = xp[:, :, t * stride:t * stride + K]            # (N, C_in, K)
        y[:, :, t] = (seg * np.asarray(dw_w)[None]).sum(-1) + np.asarray(dw_b)
    out = np.einsum("oc,ncl->nol", np.asarray(pw_w), y) + np.asarray(pw_b)[None, :, None]
    return out


if __name__ == "__main__":
    # Module config (small, consistent with the nn.Module __init__):
    N, C_in, C_out, L = 2, 4, 8, 16
    K, stride, padding = 3, 1, 1

    key = jax.random.PRNGKey(0)
    kx, k1, k2, k3, k4 = jax.random.split(key, 5)

    x = jax.random.normal(kx, (N, C_in, L), dtype=jnp.float32)

    # Deterministic PyTorch-style uniform init (bound = 1/sqrt(fan_in)).
    dw_bound = 1.0 / np.sqrt(1 * K)          # depthwise: (in_ch/groups) * K = K
    pw_bound = 1.0 / np.sqrt(C_in * 1)       # pointwise: C_in * 1
    dw_w = jax.random.uniform(k1, (C_in, K), jnp.float32, -dw_bound, dw_bound)
    dw_b = jax.random.uniform(k2, (C_in,), jnp.float32, -dw_bound, dw_bound)
    pw_w = jax.random.uniform(k3, (C_out, C_in), jnp.float32, -pw_bound, pw_bound)
    pw_b = jax.random.uniform(k4, (C_out,), jnp.float32, -pw_bound, pw_bound)

    out = depthwise_separable_conv1d(x, dw_w, dw_b, pw_w, pw_b,
                                     stride=stride, padding=padding)
    out = jax.block_until_ready(out)

    ref = _ref_np(x, dw_w, dw_b, pw_w, pw_b, K, stride, padding)
    np.testing.assert_allclose(np.asarray(out), ref, rtol=1e-4, atol=1e-4)

    print("KERNEL_OK")
</pallas_src>

<mosaic_0001>
module attributes {stable_mosaic.version = 11 : i64} {
  func.func @kernel(%arg0: i32, %arg1: memref<1x4x36xf32, #tpu.memory_space<vmem>>, %arg2: memref<4x3xf32, #tpu.memory_space<vmem>>, %arg3: memref<4x1xf32, #tpu.memory_space<vmem>>, %arg4: memref<8x4xf32, #tpu.memory_space<vmem>>, %arg5: memref<8x1xf32, #tpu.memory_space<vmem>>, %arg6: memref<1x8x34xf32, #tpu.memory_space<vmem>>) attributes {dimension_semantics = [#tpu.dimension_semantics<parallel>], iteration_bounds = array<i64: 1>, scalar_prefetch = 0 : i64, scratch_operands = 0 : i64, tpu.core_type = #tpu.core_type<tc>, window_params = [{transform_indices = @transform_0, window_bounds = array<i64: 1, 4, 36>}, {pipeline_mode = #tpu.pipeline_mode<synchronous>, transform_indices = @transform_1, window_bounds = array<i64: 4, 3>}, {pipeline_mode = #tpu.pipeline_mode<synchronous>, transform_indices = @transform_2, window_bounds = array<i64: 4, 1>}, {pipeline_mode = #tpu.pipeline_mode<synchronous>, transform_indices = @transform_3, window_bounds = array<i64: 8, 4>}, {pipeline_mode = #tpu.pipeline_mode<synchronous>, transform_indices = @transform_4, window_bounds = array<i64: 8, 1>}, {transform_indices = @transform_5, window_bounds = array<i64: 1, 8, 34>}]} {
    %c0 = arith.constant 0 : index
    %c0_0 = arith.constant 0 : index
    %c0_1 = arith.constant 0 : index
    %0 = vector.load %arg1[%c0, %c0_0, %c0_1] : memref<1x4x36xf32, #tpu.memory_space<vmem>>, vector<1x4x36xf32>
    %1 = vector.shape_cast %0 : vector<1x4x36xf32> to vector<4x36xf32>
    %c0_2 = arith.constant 0 : index
    %c0_3 = arith.constant 0 : index
    %2 = vector.load %arg2[%c0_2, %c0_3] : memref<4x3xf32, #tpu.memory_space<vmem>>, vector<4x3xf32>
    %cst = arith.constant 0.000000e+00 : f32
    %3 = vector.broadcast %cst : f32 to vector<4x34xf32>
    %4 = vector.extract_strided_slice %2 {offsets = [0, 0], sizes = [4, 1], strides = [1, 1]} : vector<4x3xf32> to vector<4x1xf32>
    %5 = vector.extract_strided_slice %1 {offsets = [0, 0], sizes = [4, 34], strides = [1, 1]} : vector<4x36xf32> to vector<4x34xf32>
    %6 = vector.broadcast %4 : vector<4x1xf32> to vector<4x34xf32>
    %7 = arith.mulf %6, %5 : vector<4x34xf32>
    %8 = arith.addf %3, %7 : vector<4x34xf32>
    %9 = vector.extract_strided_slice %2 {offsets = [0, 1], sizes = [4, 1], strides = [1, 1]} : vector<4x3xf32> to vector<4x1xf32>
    %10 = vector.extract_strided_slice %1 {offsets = [0, 1], sizes = [4, 34], strides = [1, 1]} : vector<4x36xf32> to vector<4x34xf32>
    %11 = vector.broadcast %9 : vector<4x1xf32> to vector<4x34xf32>
    %12 = arith.mulf %11, %10 : vector<4x34xf32>
    %13 = arith.addf %8, %12 : vector<4x34xf32>
    %14 = vector.extract_strided_slice %2 {offsets = [0, 2], sizes = [4, 1], strides = [1, 1]} : vector<4x3xf32> to vector<4x1xf32>
    %15 = vector.extract_strided_slice %1 {offsets = [0, 2], sizes = [4, 34], strides = [1, 1]} : vector<4x36xf32> to vector<4x34xf32>
    %16 = vector.broadcast %14 : vector<4x1xf32> to vector<4x34xf32>
    %17 = arith.mulf %16, %15 : vector<4x34xf32>
    %18 = arith.addf %13, %17 : vector<4x34xf32>
    %c0_4 = arith.constant 0 : index
    %c0_5 = arith.constant 0 : index
    %19 = vector.load %arg3[%c0_4, %c0_5] : memref<4x1xf32, #tpu.memory_space<vmem>>, vector<4x1xf32>
    %20 = vector.broadcast %19 : vector<4x1xf32> to vector<4x34xf32>
    %21 = arith.addf %18, %20 : vector<4x34xf32>
    %c0_6 = arith.constant 0 : index
    %c0_7 = arith.constant 0 : index
    %22 = vector.load %arg5[%c0_6, %c0_7] : memref<8x1xf32, #tpu.memory_space<vmem>>, vector<8x1xf32>
    %c0_8 = arith.constant 0 : index
    %c0_9 = arith.constant 0 : index
    %23 = vector.load %arg4[%c0_8, %c0_9] : memref<8x4xf32, #tpu.memory_space<vmem>>, vector<8x4xf32>
    %cst_10 = arith.constant 0.000000e+00 : f32
    %24 = vector.broadcast %cst_10 : f32 to vector<8x34xf32>
    %25 = vector.extract_strided_slice %23 {offsets = [0, 0], sizes = [8, 1], strides = [1, 1]} : vector<8x4xf32> to vector<8x1xf32>
    %26 = vector.extract_strided_slice %21 {offsets = [0, 0], sizes = [1, 34], strides = [1, 1]} : vector<4x34xf32> to vector<1x34xf32>
    %27 = vector.broadcast %25 : vector<8x1xf32> to vector<8x34xf32>
    %28 = vector.broadcast %26 : vector<1x34xf32> to vector<8x34xf32>
    %29 = arith.mulf %27, %28 : vector<8x34xf32>
    %30 = arith.addf %24, %29 : vector<8x34xf32>
    %31 = vector.extract_strided_slice %23 {offsets = [0, 1], sizes = [8, 1], strides = [1, 1]} : vector<8x4xf32> to vector<8x1xf32>
    %32 = vector.extract_strided_slice %21 {offsets = [1, 0], sizes = [1, 34], strides = [1, 1]} : vector<4x34xf32> to vector<1x34xf32>
    %33 = vector.broadcast %31 : vector<8x1xf32> to vector<8x34xf32>
    %34 = vector.broadcast %32 : vector<1x34xf32> to vector<8x34xf32>
    %35 = arith.mulf %33, %34 : vector<8x34xf32>
    %36 = arith.addf %30, %35 : vector<8x34xf32>
    %37 = vector.extract_strided_slice %23 {offsets = [0, 2], sizes = [8, 1], strides = [1, 1]} : vector<8x4xf32> to vector<8x1xf32>
    %38 = vector.extract_strided_slice %21 {offsets = [2, 0], sizes = [1, 34], strides = [1, 1]} : vector<4x34xf32> to vector<1x34xf32>
    %39 = vector.broadcast %37 : vector<8x1xf32> to vector<8x34xf32>
    %40 = vector.broadcast %38 : vector<1x34xf32> to vector<8x34xf32>
    %41 = arith.mulf %39, %40 : vector<8x34xf32>
    %42 = arith.addf %36, %41 : vector<8x34xf32>
    %43 = vector.extract_strided_slice %23 {offsets = [0, 3], sizes = [8, 1], strides = [1, 1]} : vector<8x4xf32> to vector<8x1xf32>
    %44 = vector.extract_strided_slice %21 {offsets = [3, 0], sizes = [1, 34], strides = [1, 1]} : vector<4x34xf32> to vector<1x34xf32>
    %45 = vector.broadcast %43 : vector<8x1xf32> to vector<8x34xf32>
    %46 = vector.broadcast %44 : vector<1x34xf32> to vector<8x34xf32>
    %47 = arith.mulf %45, %46 : vector<8x34xf32>
    %48 = arith.addf %42, %47 : vector<8x34xf32>
    %49 = vector.broadcast %22 : vector<8x1xf32> to vector<8x34xf32>
    %50 = arith.addf %48, %49 : vector<8x34xf32>
    %c0_11 = arith.constant 0 : index
    %c0_12 = arith.constant 0 : index
    %c0_13 = arith.constant 0 : index
    %51 = vector.load %arg6[%c0_11, %c0_12, %c0_13] : memref<1x8x34xf32, #tpu.memory_space<vmem>>, vector<1x8x34xf32>
    %52 = vector.shape_cast %51 : vector<1x8x34xf32> to vector<8x34xf32>
    %53 = vector.shape_cast %50 : vector<8x34xf32> to vector<1x8x34xf32>
    tpu.vector_store %arg6[%c0_11, %c0_12, %c0_13], %53 {strides = array<i32>} : memref<1x8x34xf32, #tpu.memory_space<vmem>>, vector<1x8x34xf32>,
    return
  }
  func.func @transform_0(%arg0: i32) -> (i32, i32, i32) {
    %c0_i32 = arith.constant 0 : i32
    %c0_i32_0 = arith.constant 0 : i32
    %c0_i32_1 = arith.constant 0 : i32
    return %arg0, %c0_i32, %c0_i32_0 : i32, i32, i32
  }
  func.func @transform_1(%arg0: i32) -> (i32, i32) {
    %c0_i32 = arith.constant 0 : i32
    %c0_i32_0 = arith.constant 0 : i32
    %c0_i32_1 = arith.constant 0 : i32
    return %c0_i32, %c0_i32_0 : i32, i32
  }
  func.func @transform_2(%arg0: i32) -> (i32, i32) {
    %c0_i32 = arith.constant 0 : i32
    %c0_i32_0 = arith.constant 0 : i32
    %c0_i32_1 = arith.constant 0 : i32
    return %c0_i32, %c0_i32_0 : i32, i32
  }
  func.func @transform_3(%arg0: i32) -> (i32, i32) {
    %c0_i32 = arith.constant 0 : i32
    %c0_i32_0 = arith.constant 0 : i32
    %c0_i32_1 = arith.constant 0 : i32
    return %c0_i32, %c0_i32_0 : i32, i32
  }
  func.func @transform_4(%arg0: i32) -> (i32, i32) {
    %c0_i32 = arith.constant 0 : i32
    %c0_i32_0 = arith.constant 0 : i32
    %c0_i32_1 = arith.constant 0 : i32
    return %c0_i32, %c0_i32_0 : i32, i32
  }
  func.func @transform_5(%arg0: i32) -> (i32, i32, i32) {
    %c0_i32 = arith.constant 0 : i32
    %c0_i32_0 = arith.constant 0 : i32
    %c0_i32_1 = arith.constant 0 : i32
    return %arg0, %c0_i32, %c0_i32_0 : i32, i32, i32
  }
}

</mosaic_0001>

<llo_original>
// kernel: tpu_custom_call.1
$region0: #{tpu_custom_call.1}
  #allocation0 [shape = 'u32[]', space=smem, size = 0x4, offset = 0x4, fixed_abs, tag = 'smem constant byte address 0x4 - core index']
  #allocation1 [shape = 'u32[144,128]{1,0:T(1,128)}', space=vmem, size = 0x12000, scoped, tag = 'internal scratch']
  %s0 = inlined_call_operand.vmem [shape: f32[1,4,36], index: 0, kind: input, shape index: {}]
  %s1 = inlined_call_operand.vmem [shape: f32[4,3], index: 1, kind: input, shape index: {}]
  %s2 = inlined_call_operand.vmem [shape: f32[4,1], index: 2, kind: input, shape index: {}]
  %s3 = inlined_call_operand.vmem [shape: f32[8,4], index: 3, kind: input, shape index: {}]
  %s4 = inlined_call_operand.vmem [shape: f32[8,1], index: 4, kind: input, shape index: {}]
  %s5 = inlined_call_operand.hbm [shape: f32[1,8,34], index: 5, kind: output, shape index: {}]
  %s6 = sld [smem:[#allocation0]]
  $region30: #{tpu_custom_call.1} parent=0
    _
  %s8 = ssub.s32 1, %s6
  %s9 = scalar_select 0, %s8, %s6
  $region1: #{tpu_custom_call.1} parent=0
    #allocation2 [shape = 'u8[4096]{0}', space=vmem, size = 0x1000, scoped, tag = 'output window, operand 0, single buffered']
    #allocation3 [shape = 's32[1]{0}', space=sflag, size = 0x4, scoped, tag = 'scoped memory for tpu_custom_call.1']
    %10 = vsyncpa [#allocation3], 0
    // Predicated region
    $region2: #{tpu_custom_call.1} parent=1 // pred_check
      _
    $region3: #{tpu_custom_call.1} parent=1 // pred_check_branch
      %12 = sbr.rel (0) target = $region5
    $region4: #{tpu_custom_call.1} parent=1 // pred_region
      _
    $region5: #{tpu_custom_call.1} parent=1 // pred_fallthru
      _
    // Predicated region
    $region6: #{tpu_custom_call.1} parent=1 // pred_check
      _
    $region7: #{tpu_custom_call.1} parent=1 // pred_check_branch
      %14 = sbr.rel (0) target = $region9
    $region8: #{tpu_custom_call.1} parent=1 // pred_region
      _
    $region9: #{tpu_custom_call.1} parent=1 // pred_fallthru
      _
    // Predicated region
    $region10: #{tpu_custom_call.1} parent=1 // pred_check
      _
    $region11: #{tpu_custom_call.1} parent=1 // pred_check_branch
      %16 = sbr.rel (0) target = $region13
    $region12: #{tpu_custom_call.1} parent=1 // pred_region
      _
    $region13: #{tpu_custom_call.1} parent=1 // pred_fallthru
      _
    // Predicated region
    $region14: #{tpu_custom_call.1} parent=1 // pred_check
      _
    $region15: #{tpu_custom_call.1} parent=1 // pred_check_branch
      %18 = sbr.rel (0) target = $region17
    $region16: #{tpu_custom_call.1} parent=1 // pred_region
      _
    $region17: #{tpu_custom_call.1} parent=1 // pred_fallthru
      _
    // Predicated region
    $region18: #{tpu_custom_call.1} parent=1 // pred_check
      _
    $region19: #{tpu_custom_call.1} parent=1 // pred_check_branch
      %20 = sbr.rel (0) target = $region21
    $region20: #{tpu_custom_call.1} parent=1 // pred_region
      _
    $region21: #{tpu_custom_call.1} parent=1 // pred_fallthru
      _
    %v21 = vld [vmem:[%s0] sm:$0xf]
    %v22 = vld [vmem:[%s1] sm:$0xf]
    %24 = vset.pattern.permute.xlu0 0
    %25 = vperm.xlu0 %24, %v22
    %v26 = vpop.permute.xlu0 %25
    %v28 = vmul.f32 %v26, %v21
    %v29 = vadd.f32 %v28, 0.0
    %30 = vset.pattern.permute.xlu0 1
    %31 = vperm.xlu0 %30, %v22
    %v32 = vpop.permute.xlu0 %31
    %v34 = vmul.f32 %v32, %v21
    %36 = vrot.lane.b32.xlu0 %v34, 127
    %v37 = vpop.permute.xlu0 %36
    %v39 = vadd.f32 %v29, %v37
    %40 = vset.pattern.permute.xlu0 2
    %41 = vperm.xlu0 %40, %v22
    %v42 = vpop.permute.xlu0 %41
    %v44 = vmul.f32 %v42, %v21
    %46 = vrot.lane.b32.xlu0 %v44, 126
    %v47 = vpop.permute.xlu0 %46
    %v49 = vadd.f32 %v39, %v47
    %v50 = vld [vmem:[%s2] sm:$0xf]
    %52 = vset.pattern.permute.xlu0 0
    %53 = vperm.xlu0 %52, %v50
    %v54 = vpop.permute.xlu0 %53
    %v56 = vadd.f32 %v49, %v54
    %v57 = vld [vmem:[%s4] sm:$0xff]
    %v58 = vld [vmem:[%s3] sm:$0xff]
    %60 = vset.pattern.permute.xlu0 0
    %61 = vperm.xlu0 %60, %v58
    %v62 = vpop.permute.xlu0 %61
    %v64 = vlaneseq
    %v65 = vshrl.u32 %v64, 7
    %v66 = vsub.s32 0, %v65
    %v67 = vrot.slane %v56, %v66
    %v68 = vmul.f32 %v62, %v67
    %v69 = vadd.f32 %v68, 0.0
    %70 = vset.pattern.permute.xlu0 1
    %71 = vperm.xlu0 %70, %v58
    %v72 = vpop.permute.xlu0 %71
    %v74 = vlaneseq
    %v75 = vshrl.u32 %v74, 7
    %v76 = vsub.s32 1, %v75
    %v77 = vrot.slane %v56, %v76
    %v78 = vmul.f32 %v72, %v77
    %v79 = vadd.f32 %v69, %v78
    %80 = vset.pattern.permute.xlu0 2
    %81 = vperm.xlu0 %80, %v58
    %v82 = vpop.permute.xlu0 %81
    %v84 = vlaneseq
    %v85 = vshrl.u32 %v84, 7
    %v86 = vsub.s32 2, %v85
    %v87 = vrot.slane %v56, %v86
    %v88 = vmul.f32 %v82, %v87
    %v89 = vadd.f32 %v79, %v88
    %90 = vset.pattern.permute.xlu0 3
    %91 = vperm.xlu0 %90, %v58
    %v92 = vpop.permute.xlu0 %91
    %v94 = vlaneseq
    %v95 = vshrl.u32 %v94, 7
    %v96 = vsub.s32 3, %v95
    %v97 = vrot.slane %v56, %v96
    %v98 = vmul.f32 %v92, %v97
    %v99 = vadd.f32 %v89, %v98
    %101 = vset.pattern.permute.xlu0 0
    %102 = vperm.xlu0 %101, %v57
    %v103 = vpop.permute.xlu0 %102
    %v105 = vadd.f32 %v99, %v103
    %vm106 = vcmask 277504
    %107 = vst.msk [vmem:[#allocation2] sm:$0xff] %vm106, %v105
    // Predicated region
    $region22: #{tpu_custom_call.1} parent=1 // pred_check
      _
    $region23: #{tpu_custom_call.1} parent=1 // pred_check_branch
      %109 = sbr.rel (0) target = $region25
    $region24: #{tpu_custom_call.1} parent=1 // pred_region
      %s111 = ssub.s32 128, 128
      %112 = vsyncadd [#allocation3], %s111
      %s114 = sshll.u32 [#allocation2], 4
      %s115 = int_to_ptr.vmem [resolvable:$true] %s114
      %117 = dma.vmem_to_hbm [thread:$0]  %s115, 128, %s5, [#allocation3]
    $region25: #{tpu_custom_call.1} parent=1 // pred_fallthru
      _
    // Predicated region
    $region26: #{tpu_custom_call.1} parent=1 // pred_check
      _
    $region27: #{tpu_custom_call.1} parent=1 // pred_check_branch
      %119 = sbr.rel (0) target = $region29
    $region28: #{tpu_custom_call.1} parent=1 // pred_region
      %120 = dma.done [#allocation3], 128
    $region29: #{tpu_custom_call.1} parent=1 // pred_fallthru
      _
    %121 = vsyncpa [#allocation3], 1

</llo_original>
